<compile_context>
chip_gen: v6e
topology: v6e:2x2x1
jax: 0.10.0
libtpu: 0.0.40
codegen_flags: <defaults>
</compile_context>

<pallas_src>
import functools

import jax
import jax.numpy as jnp
from jax.experimental import pallas as pl
from jax.experimental.pallas import tpu as pltpu

EPSILON = 0.01  # matches the module default (reduction='mean')


def _ls_ce_kernel(preds_ref, target_ref, out_ref, *, n_total, c_total,
                  block_rows, tiles_per_split, epsilon):
    p = pl.program_id(0)   # batch split (parallel -> one TensorCore each on v7x)
    t = pl.program_id(1)   # row-tile within the split (arbitrary -> reduction)

    @pl.when(t == 0)
    def _init():
        out_ref[...] = jnp.zeros_like(out_ref)

    x = preds_ref[...]     # (block_rows, C), input dtype (f32 or bf16)
    tgt = target_ref[...]  # (block_rows, 1), int32

    # Row-wise statistics -- log-softmax is never materialized.
    m = jnp.max(x, axis=-1, keepdims=True)                       # input dtype
    s = jnp.sum(jnp.exp((x - m).astype(jnp.float32)),
                axis=-1, keepdims=True)                          # f32 accum
    lse = m.astype(jnp.float32) + jnp.log(s)                     # (rows, 1) f32
    sum_x = jnp.sum(x, axis=-1, keepdims=True, dtype=jnp.float32)
    onehot = jax.lax.broadcasted_iota(jnp.int32, x.shape, 1) == tgt
    g = jnp.sum(jnp.where(onehot, x, jnp.zeros_like(x)),
                axis=-1, keepdims=True, dtype=jnp.float32)       # x[i, tgt[i]]

    row_neg_sum = c_total * lse - sum_x   # -sum_j logp[i, j]
    nll_row = lse - g                     # -logp[i, target[i]]

    # Mask rows past the true batch size (padded / partial last tile).
    tile_idx = p * tiles_per_split + t
    row_idx = tile_idx * block_rows + jax.lax.broadcasted_iota(
        jnp.int32, (block_rows, 1), 0)
    valid = row_idx < n_total

    a = epsilon / (n_total * c_total)
    b = (1.0 - epsilon) / n_total
    contrib = jnp.where(valid, a * row_neg_sum + b * nll_row, 0.0)
    out_ref[...] += jnp.sum(contrib, axis=0, keepdims=True)      # (1, 1)


def label_smoothing_cross_entropy(preds, target, *, epsilon=EPSILON,
                                  block_rows=None, num_splits=None):
    """preds: (N, C) float array, target: (N,) int array -> scalar f32."""
    n, c = preds.shape
    target2d = target.astype(jnp.int32).reshape(n, 1)
    dtype_bytes = jnp.dtype(preds.dtype).itemsize

    if block_rows is None:
        # Largest row-tile with ~4 MiB per input buffer (Pallas double-buffers it),
        # comfortably under the default scoped-VMEM limit on v5e / v6e / v7x.
        budget_bytes = 4 * 1024 * 1024
        tn = budget_bytes // max(1, c * dtype_bytes)
        tn = min(1024, max(8, (tn // 8) * 8))
        block_rows = n if tn >= n else tn

    num_tiles = pl.cdiv(n, block_rows)
    if num_splits is None:
        # 2-way batch split exploits both TensorCores on v7x; it is a no-cost
        # sequential loop on single-TC v5e/v6e. Only used when tiles split evenly.
        num_splits = 2 if (num_tiles >= 2 and num_tiles % 2 == 0) else 1
    tiles_per_split = num_tiles // num_splits

    kernel = functools.partial(
        _ls_ce_kernel, n_total=n, c_total=c, block_rows=block_rows,
        tiles_per_split=tiles_per_split, epsilon=float(epsilon))

    bytes_in = n * c * dtype_bytes + n * 4
    cost = pl.CostEstimate(flops=6 * n * c,
                           transcendentals=n * c + n,
                           bytes_accessed=bytes_in + num_splits * 4)

    partials = pl.pallas_call(
        kernel,
        out_shape=jax.ShapeDtypeStruct((num_splits, 1, 1), jnp.float32),
        grid_spec=pltpu.PrefetchScalarGridSpec(
            num_scalar_prefetch=0,
            grid=(num_splits, tiles_per_split),
            in_specs=[
                pl.BlockSpec((block_rows, c),
                             lambda p, t: (p * tiles_per_split + t, 0)),
                pl.BlockSpec((block_rows, 1),
                             lambda p, t: (p * tiles_per_split + t, 0)),
            ],
            # Leading split dim squeezed; each split owns its own (1,1) block,
            # which stays VMEM-resident across the "arbitrary" tile axis.
            out_specs=pl.BlockSpec((None, 1, 1), lambda p, t: (p, 0, 0)),
        ),
        compiler_params=pltpu.CompilerParams(
            dimension_semantics=("parallel", "arbitrary"),
            vmem_limit_bytes=32 * 1024 * 1024,
        ),
        cost_estimate=cost,
    )(preds, target2d)

    # Tiny scalar finalize in the wrapper: partials already carry the epsilon blend.
    return jnp.sum(partials)


def _reference(preds, target, epsilon=EPSILON):
    logp = jax.nn.log_softmax(preds.astype(jnp.float32), axis=-1)
    c = preds.shape[-1]
    loss = jnp.mean(-jnp.sum(logp, axis=-1))
    nll = jnp.mean(
        -jnp.take_along_axis(logp, target[:, None].astype(jnp.int32), axis=-1)[:, 0])
    return epsilon * (loss / c) + (1.0 - epsilon) * nll


if __name__ == "__main__":
    key = jax.random.PRNGKey(0)
    k1, k2 = jax.random.split(key)
    # CIFAR-10 style logits: small batch, 10 classes (odd N exercises row masking).
    N, C = 30, 10
    preds = jax.random.normal(k1, (N, C), dtype=jnp.float32)
    target = jax.random.randint(k2, (N,), 0, C, dtype=jnp.int32)

    ref = _reference(preds, target)

    # Default tiling: whole batch fits one tile -> single grid step.
    out = jax.block_until_ready(label_smoothing_cross_entropy(preds, target))
    assert jnp.allclose(out, ref, atol=1e-5, rtol=1e-5), (out, ref)

    # Force the tiled-reduction + 2-way split path (4 row-tiles of 8, last one
    # partial): exercises the accumulator grid, the row mask and both splits.
    out2 = jax.block_until_ready(
        label_smoothing_cross_entropy(preds, target, block_rows=8))
    assert jnp.allclose(out2, ref, atol=1e-5, rtol=1e-5), (out2, ref)

    print("KERNEL_OK")
</pallas_src>

<mosaic_0001>
module attributes {stable_mosaic.version = 11 : i64} {
  func.func @_ls_ce_kernel(%arg0: i32, %arg1: i32, %arg2: memref<30x10xf32, #tpu.memory_space<vmem>>, %arg3: memref<30x1xi32, #tpu.memory_space<vmem>>, %arg4: memref<1x1x1xf32, #tpu.memory_space<vmem>>) attributes {dimension_semantics = [#tpu.dimension_semantics<parallel>, #tpu.dimension_semantics<arbitrary>], iteration_bounds = array<i64: 1, 1>, scalar_prefetch = 0 : i64, scratch_operands = 0 : i64, tpu.core_type = #tpu.core_type<tc>, window_params = [{transform_indices = @transform_0, window_bounds = array<i64: 30, 10>}, {transform_indices = @transform_1, window_bounds = array<i64: 30, 1>}, {transform_indices = @transform_2, window_bounds = array<i64: 1, 1, 1>}]} {
    %c0_i32 = arith.constant 0 : i32
    %0 = arith.cmpi eq, %arg1, %c0_i32 : i32
    %1 = arith.extui %0 : i1 to i32
    %c0_i32_0 = arith.constant 0 : i32
    %2 = arith.cmpi ne, %1, %c0_i32_0 : i32
    scf.if %2 {
      %cst_20 = arith.constant 0.000000e+00 : f32
      %50 = vector.broadcast %cst_20 : f32 to vector<1x1xf32>
      %c0_21 = arith.constant 0 : index
      %c0_22 = arith.constant 0 : index
      %c0_23 = arith.constant 0 : index
      %51 = vector.load %arg4[%c0_21, %c0_22, %c0_23] : memref<1x1x1xf32, #tpu.memory_space<vmem>>, vector<1x1x1xf32>
      %52 = vector.shape_cast %51 : vector<1x1x1xf32> to vector<1x1xf32>
      %53 = vector.shape_cast %50 : vector<1x1xf32> to vector<1x1x1xf32>
      tpu.vector_store %arg4[%c0_21, %c0_22, %c0_23], %53 {strides = array<i32>} : memref<1x1x1xf32, #tpu.memory_space<vmem>>, vector<1x1x1xf32>,
    } else {
    }
    %c0 = arith.constant 0 : index
    %c0_1 = arith.constant 0 : index
    %3 = vector.load %arg2[%c0, %c0_1] : memref<30x10xf32, #tpu.memory_space<vmem>>, vector<30x10xf32>
    %c0_2 = arith.constant 0 : index
    %c0_3 = arith.constant 0 : index
    %4 = vector.load %arg3[%c0_2, %c0_3] : memref<30x1xi32, #tpu.memory_space<vmem>>, vector<30x1xi32>
    %cst = arith.constant dense<0xFF800000> : vector<30xf32>
    %5 = vector.multi_reduction <maximumf>, %3, %cst [1] : vector<30x10xf32> to vector<30xf32>
    %6 = vector.shape_cast %5 : vector<30xf32> to vector<30x1xf32>
    %7 = vector.broadcast %6 : vector<30x1xf32> to vector<30x10xf32>
    %8 = arith.subf %3, %7 : vector<30x10xf32>
    %9 = math.exp %8 : vector<30x10xf32>
    %cst_4 = arith.constant dense<0.000000e+00> : vector<30xf32>
    %10 = vector.multi_reduction <add>, %9, %cst_4 [1] : vector<30x10xf32> to vector<30xf32>
    %11 = vector.shape_cast %10 : vector<30xf32> to vector<30x1xf32>
    %12 = math.log %11 : vector<30x1xf32>
    %13 = arith.addf %6, %12 : vector<30x1xf32>
    %cst_5 = arith.constant dense<0.000000e+00> : vector<30xf32>
    %14 = vector.multi_reduction <add>, %3, %cst_5 [1] : vector<30x10xf32> to vector<30xf32>
    %15 = vector.shape_cast %14 : vector<30xf32> to vector<30x1xf32>
    %16 = tpu.iota {dimensions = array<i32: 1>} : vector<30x10xi32>
    %17 = vector.broadcast %4 : vector<30x1xi32> to vector<30x10xi32>
    %18 = arith.cmpi eq, %16, %17 : vector<30x10xi32>
    %cst_6 = arith.constant 0.000000e+00 : f32
    %19 = vector.broadcast %cst_6 : f32 to vector<30x10xf32>
    %20 = arith.select %18, %3, %19 : vector<30x10xi1>, vector<30x10xf32>
    %cst_7 = arith.constant dense<0.000000e+00> : vector<30xf32>
    %21 = vector.multi_reduction <add>, %20, %cst_7 [1] : vector<30x10xf32> to vector<30xf32>
    %22 = vector.shape_cast %21 : vector<30xf32> to vector<30x1xf32>
    %cst_8 = arith.constant 1.000000e+01 : f32
    %23 = vector.broadcast %cst_8 : f32 to vector<30x1xf32>
    %24 = arith.mulf %23, %13 : vector<30x1xf32>
    %25 = arith.subf %24, %15 : vector<30x1xf32>
    %26 = arith.subf %13, %22 : vector<30x1xf32>
    %c1_i32 = arith.constant 1 : i32
    %27 = arith.muli %arg0, %c1_i32 : i32
    %28 = arith.addi %27, %arg1 : i32
    %c30_i32 = arith.constant 30 : i32
    %29 = arith.muli %28, %c30_i32 : i32
    %30 = tpu.iota {dimensions = array<i32: 0>} : vector<30x1xi32>
    %31 = vector.broadcast %29 : i32 to vector<30x1xi32>
    %32 = arith.addi %31, %30 : vector<30x1xi32>
    %c30_i32_9 = arith.constant 30 : i32
    %33 = vector.broadcast %c30_i32_9 : i32 to vector<30x1xi32>
    %34 = arith.cmpi slt, %32, %33 : vector<30x1xi32>
    %cst_10 = arith.constant 3.33333337E-5 : f32
    %35 = vector.broadcast %cst_10 : f32 to vector<30x1xf32>
    %36 = arith.mulf %35, %25 : vector<30x1xf32>
    %cst_11 = arith.constant 3.300000e-02 : f32
    %37 = vector.broadcast %cst_11 : f32 to vector<30x1xf32>
    %38 = arith.mulf %37, %26 : vector<30x1xf32>
    %39 = arith.addf %36, %38 : vector<30x1xf32>
    %cst_12 = arith.constant 0.000000e+00 : f32
    %40 = vector.broadcast %cst_12 : f32 to vector<30x1xf32>
    %41 = arith.select %34, %39, %40 : vector<30x1xi1>, vector<30x1xf32>
    %c0_13 = arith.constant 0 : index
    %c0_14 = arith.constant 0 : index
    %c0_15 = arith.constant 0 : index
    %42 = vector.load %arg4[%c0_13, %c0_14, %c0_15] : memref<1x1x1xf32, #tpu.memory_space<vmem>>, vector<1x1x1xf32>
    %43 = vector.shape_cast %42 : vector<1x1x1xf32> to vector<1x1xf32>
    %cst_16 = arith.constant dense<0.000000e+00> : vector<1xf32>
    %44 = vector.multi_reduction <add>, %41, %cst_16 [0] : vector<30x1xf32> to vector<1xf32>
    %45 = vector.shape_cast %44 : vector<1xf32> to vector<1x1xf32>
    %46 = arith.addf %43, %45 : vector<1x1xf32>
    %c0_17 = arith.constant 0 : index
    %c0_18 = arith.constant 0 : index
    %c0_19 = arith.constant 0 : index
    %47 = vector.load %arg4[%c0_17, %c0_18, %c0_19] : memref<1x1x1xf32, #tpu.memory_space<vmem>>, vector<1x1x1xf32>
    %48 = vector.shape_cast %47 : vector<1x1x1xf32> to vector<1x1xf32>
    %49 = vector.shape_cast %46 : vector<1x1xf32> to vector<1x1x1xf32>
    tpu.vector_store %arg4[%c0_17, %c0_18, %c0_19], %49 {strides = array<i32>} : memref<1x1x1xf32, #tpu.memory_space<vmem>>, vector<1x1x1xf32>,
    return
  }
  func.func @transform_0(%arg0: i32, %arg1: i32) -> (i32, i32) {
    %c1_i32 = arith.constant 1 : i32
    %0 = arith.muli %arg0, %c1_i32 : i32
    %1 = arith.addi %0, %arg1 : i32
    %c0_i32 = arith.constant 0 : i32
    %c0_i32_0 = arith.constant 0 : i32
    return %1, %c0_i32 : i32, i32
  }
  func.func @transform_1(%arg0: i32, %arg1: i32) -> (i32, i32) {
    %c1_i32 = arith.constant 1 : i32
    %0 = arith.muli %arg0, %c1_i32 : i32
    %1 = arith.addi %0, %arg1 : i32
    %c0_i32 = arith.constant 0 : i32
    %c0_i32_0 = arith.constant 0 : i32
    return %1, %c0_i32 : i32, i32
  }
  func.func @transform_2(%arg0: i32, %arg1: i32) -> (i32, i32, i32) {
    %c0_i32 = arith.constant 0 : i32
    %c0_i32_0 = arith.constant 0 : i32
    %c0_i32_1 = arith.constant 0 : i32
    return %arg0, %c0_i32, %c0_i32_0 : i32, i32, i32
  }
}

</mosaic_0001>

<llo_original>
// kernel: tpu_custom_call.1
$region0: #{tpu_custom_call.1}
  #allocation0 [shape = 'u32[]', space=smem, size = 0x4, offset = 0x4, fixed_abs, tag = 'smem constant byte address 0x4 - core index']
  #allocation1 [shape = 'u32[144,128]{1,0:T(1,128)}', space=vmem, size = 0x12000, scoped, tag = 'internal scratch']
  %s0 = inlined_call_operand.vmem [shape: f32[30,10], index: 0, kind: input, shape index: {}]
  %s1 = inlined_call_operand.vmem [shape: s32[30,1], index: 1, kind: input, shape index: {}]
  %s2 = inlined_call_operand.hbm [shape: f32[1,1,1], index: 2, kind: output, shape index: {}]
  %s3 = sld [smem:[#allocation0]]
  $region22: #{tpu_custom_call.1} parent=0
    _
  %s5 = ssub.s32 1, %s3
  %s6 = scalar_select 0, %s5, %s3
  $region1: #{tpu_custom_call.1} parent=0
    #allocation2 [shape = 'u8[512]{0}', space=vmem, size = 0x400, scoped, tag = 'output window, operand 0, single buffered']
    #allocation3 [shape = 's32[1]{0}', space=sflag, size = 0x4, scoped, tag = 'scoped memory for tpu_custom_call.1']
    %7 = vsyncpa [#allocation3], 0
    // Predicated region
    $region2: #{tpu_custom_call.1} parent=1 // pred_check
      _
    $region3: #{tpu_custom_call.1} parent=1 // pred_check_branch
      %9 = sbr.rel (0) target = $region5
    $region4: #{tpu_custom_call.1} parent=1 // pred_region
      %s10 = sadd.s32 0, 0
      %s11 = smul.u32 4, %s10
      %p12 = scmp.lt.s32.totalorder %s11, 3
      %s13 = scalar_select %p12, %s11, 3
      %s14 = smul.addr %s13, 8
      %s15 = scalar_lea.vmem %s0, %s14
      %s16 = sadd.s32 0, 0
      %s17 = smul.u32 4, %s16
    $region5: #{tpu_custom_call.1} parent=1 // pred_fallthru
      _
    // Predicated region
    $region6: #{tpu_custom_call.1} parent=1 // pred_check
      _
    $region7: #{tpu_custom_call.1} parent=1 // pred_check_branch
      %19 = sbr.rel (0) target = $region9
    $region8: #{tpu_custom_call.1} parent=1 // pred_region
      %s20 = sadd.s32 0, 0
      %s21 = smul.u32 4, %s20
      %p22 = scmp.lt.s32.totalorder %s21, 3
      %s23 = scalar_select %p22, %s21, 3
      %s24 = smul.addr %s23, 8
      %s25 = scalar_lea.vmem %s1, %s24
      %s26 = sadd.s32 0, 0
      %s27 = smul.u32 4, %s26
    $region9: #{tpu_custom_call.1} parent=1 // pred_fallthru
      _
    %s28 = sadd.s32 0, 0
    %s29 = smul.u32 4, %s28
    %p30 = scmp.lt.s32.totalorder %s29, 3
    %s31 = scalar_select %p30, %s29, 3
    %s32 = smul.addr %s31, 8
    %s33 = scalar_lea.vmem %s0, %s32
    %s34 = sadd.s32 0, 0
    %s35 = smul.u32 4, %s34
    %p36 = scmp.lt.s32.totalorder %s35, 3
    %s37 = scalar_select %p36, %s35, 3
    %s38 = smul.addr %s37, 8
    %s39 = scalar_lea.vmem %s1, %s38
    %s40 = sadd.s32 0, 0
    %s41 = smul.u32 4, %s40
    %p42 = scmp.lt.s32.totalorder %s41, 3
    %s43 = scalar_select %p42, %s41, 3
    %s44 = smul.addr %s43, 8
    %s45 = scalar_lea.vmem %s0, %s44
    %s46 = sadd.s32 0, 0
    %s47 = smul.u32 4, %s46
    %s48 = sadd.s32 0, 0
    %s49 = smul.u32 4, %s48
    %p50 = scmp.lt.s32.totalorder %s49, 3
    %s51 = scalar_select %p50, %s49, 3
    %s52 = smul.addr %s51, 8
    %s53 = scalar_lea.vmem %s1, %s52
    %s54 = sadd.s32 0, 0
    %s55 = smul.u32 4, %s54
    %p56 = scmp.eq.s32.totalorder 0, 0
    // Predicated region
    $region10: #{tpu_custom_call.1} parent=1 // pred_check
      %p57 = pneg %p56
    $region11: #{tpu_custom_call.1} parent=1 // pred_check_branch
      %59 = sbr.rel (%p57) target = $region13
    $region12: #{tpu_custom_call.1} parent=1 // pred_region
      %vm60 = vcmask 0
      %61 = vst.msk [vmem:[#allocation2] sm:$0x1] %vm60, 0.0
    $region13: #{tpu_custom_call.1} parent=1 // pred_fallthru
      _
    %v62 = vld [vmem:[%s45] sm:$0xff]
    %v63 = vld [vmem:[%s45 + $0x8] sm:$0xff]
    %v64 = vld [vmem:[%s45 + $0x10] sm:$0xff]
    %v65 = vld [vmem:[%s45 + $0x18] sm:$0x3f]
    %v66 = vld [vmem:[%s53] sm:$0xff]
    %v67 = vld [vmem:[%s53 + $0x8] sm:$0xff]
    %v68 = vld [vmem:[%s53 + $0x10] sm:$0xff]
    %v69 = vld [vmem:[%s53 + $0x18] sm:$0x3f]
    %vm70 = vcmask 80896
    %v71 = vsel %vm70, %v62, -inf
    %72 = vmax.xlane.f32.xlu0 %v71
    %v73 = vpop.xlane.xlu0 %72
    %v74 = vsel %vm70, %v63, -inf
    %75 = vmax.xlane.f32.xlu0 %v74
    %v76 = vpop.xlane.xlu0 %75
    %v77 = vsel %vm70, %v64, -inf
    %78 = vmax.xlane.f32.xlu0 %v77
    %v79 = vpop.xlane.xlu0 %78
    %vm80 = vcmask 78848
    %v81 = vsel %vm80, %v65, -inf
    %82 = vmax.xlane.f32.xlu0 %v81
    %v83 = vpop.xlane.xlu0 %82
    %v84 = vsub.f32 %v62, %v73
    %v85 = vsub.f32 %v63, %v76
    %v86 = vsub.f32 %v64, %v79
    %v87 = vsub.f32 %v65, %v83
    %v88 = vmul.f32 %v84, 1.442695
    %v89 = vpow.pop %v88
    %v90 = vmul.f32 %v85, 1.442695
    %v91 = vpow.pop %v90
    %v92 = vmul.f32 %v86, 1.442695
    %v93 = vpow.pop %v92
    %v94 = vmul.f32 %v87, 1.442695
    %v95 = vpow.pop %v94
    %v96 = vsel %vm70, %v89, 0.0
    %97 = vadd.xlane.f32.xlu0 %v96
    %v98 = vpop.xlane.xlu0 %97
    %v99 = vsel %vm70, %v91, 0.0
    %100 = vadd.xlane.f32.xlu0 %v99
    %v101 = vpop.xlane.xlu0 %100
    %v102 = vsel %vm70, %v93, 0.0
    %103 = vadd.xlane.f32.xlu0 %v102
    %v104 = vpop.xlane.xlu0 %103
    %v105 = vsel %vm80, %v95, 0.0
    %106 = vadd.xlane.f32.xlu0 %v105
    %v107 = vpop.xlane.xlu0 %106
    %v108 = vlog2.pop %v98
    %v109 = vmul.f32 %v108, 0.6931472
    %v110 = vlog2.pop %v101
    %v111 = vmul.f32 %v110, 0.6931472
    %v112 = vlog2.pop %v104
    %v113 = vmul.f32 %v112, 0.6931472
    %v114 = vlog2.pop %v107
    %v115 = vmul.f32 %v114, 0.6931472
    %v116 = vadd.f32 %v73, %v109
    %v117 = vadd.f32 %v76, %v111
    %v118 = vadd.f32 %v79, %v113
    %v119 = vadd.f32 %v83, %v115
    %v120 = vsel %vm70, %v62, 0.0
    %121 = vadd.xlane.f32.xlu0 %v120
    %v122 = vpop.xlane.xlu0 %121
    %v123 = vsel %vm70, %v63, 0.0
    %124 = vadd.xlane.f32.xlu0 %v123
    %v125 = vpop.xlane.xlu0 %124
    %v126 = vsel %vm70, %v64, 0.0
    %127 = vadd.xlane.f32.xlu0 %v126
    %v128 = vpop.xlane.xlu0 %127
    %v129 = vsel %vm80, %v65, 0.0
    %130 = vadd.xlane.f32.xlu0 %v129
    %v131 = vpop.xlane.xlu0 %130
    %v132 = vlaneseq
    %v133 = vand.u32 %v132, 127
    %134 = vset.pattern.permute.xlu0 0
    %135 = vperm.xlu0 %134, %v66
    %v136 = vpop.permute.xlu0 %135
    %137 = vset.pattern.permute.xlu0 0
    %138 = vperm.xlu0 %137, %v67
    %v139 = vpop.permute.xlu0 %138
    %140 = vset.pattern.permute.xlu0 0
    %141 = vperm.xlu0 %140, %v68
    %v142 = vpop.permute.xlu0 %141
    %143 = vset.pattern.permute.xlu0 0
    %144 = vperm.xlu0 %143, %v69
    %v145 = vpop.permute.xlu0 %144
    %vm146 = vcmp.eq.s32.totalorder %v133, %v136
    %vm147 = vcmp.eq.s32.totalorder %v133, %v139
    %vm148 = vcmp.eq.s32.totalorder %v133, %v142
    %vm149 = vcmp.eq.s32.totalorder %v133, %v145
    %v150 = vsel %vm146, %v62, 0.0
    %v151 = vsel %vm147, %v63, 0.0
    %v152 = vsel %vm148, %v64, 0.0
    %v153 = vsel %vm149, %v65, 0.0
    %v154 = vsel %vm70, %v150, 0.0
    %155 = vadd.xlane.f32.xlu0 %v154
    %v156 = vpop.xlane.xlu0 %155
    %v157 = vsel %vm70, %v151, 0.0
    %158 = vadd.xlane.f32.xlu0 %v157
    %v159 = vpop.xlane.xlu0 %158
    %v160 = vsel %vm70, %v152, 0.0
    %161 = vadd.xlane.f32.xlu0 %v160
    %v162 = vpop.xlane.xlu0 %161
    %v163 = vsel %vm80, %v153, 0.0
    %164 = vadd.xlane.f32.xlu0 %v163
    %v165 = vpop.xlane.xlu0 %164
    %v166 = vmul.f32 %v116, 10.0
    %v167 = vmul.f32 %v117, 10.0
    %v168 = vmul.f32 %v118, 10.0
    %v169 = vmul.f32 %v119, 10.0
    %v170 = vsub.f32 %v166, %v122
    %v171 = vsub.f32 %v167, %v125
    %v172 = vsub.f32 %v168, %v128
    %v173 = vsub.f32 %v169, %v131
    %v174 = vsub.f32 %v116, %v156
    %v175 = vsub.f32 %v117, %v159
    %v176 = vsub.f32 %v118, %v162
    %v177 = vsub.f32 %v119, %v165
    %s178 = sadd.s32 0, 0
    %s179 = smul.u32 %s178, 30
    %v180 = vlaneseq
    %v181 = vshrl.u32 %v180, 7
    %v182 = vadd.s32 %v181, 8
    %v183 = vadd.s32 %v181, 16
    %v184 = vadd.s32 %v181, 24
    %v185 = vstv %s179
    %v186 = vadd.s32 %v185, %v181
    %v187 = vadd.s32 %v185, %v182
    %v188 = vadd.s32 %v185, %v183
    %v189 = vadd.s32 %v185, %v184
    %vm190 = vcmp.lt.s32.totalorder %v186, 30
    %vm191 = vcmp.lt.s32.totalorder %v187, 30
    %vm192 = vcmp.lt.s32.totalorder %v188, 30
    %vm193 = vcmp.lt.s32.totalorder %v189, 30
    %v194 = vmul.f32 %v170, 3.3333334e-05
    %v195 = vmul.f32 %v171, 3.3333334e-05
    %v196 = vmul.f32 %v172, 3.3333334e-05
    %v197 = vmul.f32 %v173, 3.3333334e-05
    %v198 = vmul.f32 %v174, 0.033
    %v199 = vmul.f32 %v175, 0.033
    %v200 = vmul.f32 %v176, 0.033
    %v201 = vmul.f32 %v177, 0.033
    %v202 = vadd.f32 %v194, %v198
    %v203 = vadd.f32 %v195, %v199
    %v204 = vadd.f32 %v196, %v200
    %v205 = vadd.f32 %v197, %v201
    %v206 = vsel %vm190, %v202, 0.0
    %v207 = vsel %vm191, %v203, 0.0
    %v208 = vsel %vm192, %v204, 0.0
    %v209 = vsel %vm193, %v205, 0.0
    %v210 = vld [vmem:[#allocation2] sm:$0x1]
    %v211 = vadd.f32 %v206, %v207
    %v212 = vadd.f32 %v211, %v208
    %vm213 = vcmask 1045504
    %v214 = vsel %vm213, %v209, 0.0
    %v215 = vadd.f32 %v212, %v214
    %v216 = vrot.slane %v215, 4
    %v217 = vadd.f32 %v215, %v216
    %v218 = vrot.slane %v217, 2
    %v219 = vadd.f32 %v217, %v218
    %v220 = vrot.slane %v219, 1
    %v221 = vadd.f32 %v219, %v220
    %v222 = vadd.f32 %v210, %v221
    %vm223 = vcmask 0
    %224 = vst.msk [vmem:[#allocation2] sm:$0x1] %vm223, %v222
    // Predicated region
    $region14: #{tpu_custom_call.1} parent=1 // pred_check
      _
    $region15: #{tpu_custom_call.1} parent=1 // pred_check_branch
      %226 = sbr.rel (0) target = $region17
    $region16: #{tpu_custom_call.1} parent=1 // pred_region
      %s228 = ssub.s32 16, 16
      %229 = vsyncadd [#allocation3], %s228
      %s231 = sshll.u32 [#allocation2], 4
      %s232 = int_to_ptr.vmem [resolvable:$true] %s231
      %234 = dma.vmem_to_hbm [thread:$0]  %s232, 16, %s2, [#allocation3]
    $region17: #{tpu_custom_call.1} parent=1 // pred_fallthru
      _
    // Predicated region
    $region18: #{tpu_custom_call.1} parent=1 // pred_check
      _
    $region19: #{tpu_custom_call.1} parent=1 // pred_check_branch
      %236 = sbr.rel (0) target = $region21
    $region20: #{tpu_custom_call.1} parent=1 // pred_region
      %237 = dma.done [#allocation3], 16
    $region21: #{tpu_custom_call.1} parent=1 // pred_fallthru
      _
    %238 = vsyncpa [#allocation3], 1

</llo_original>
